<compile_context>
chip_gen: v7x
topology: tpu7x:2x2x1
jax: 0.10.0
libtpu: 0.0.40
codegen_flags: <defaults>
</compile_context>

<pallas_src>
import math

import jax
import jax.numpy as jnp
from jax.experimental import pallas as pl
from jax.experimental.pallas import tpu as pltpu  # noqa: F401  (TPU backend import)

# ---- problem sizes (small, consistent with dense_net(input_dim, latent, layers)) ----
D = 16        # input_dim
L = 8         # latent_size
H1 = 32       # hidden layer 1
H2 = 32       # hidden layer 2
B = 16        # batch (whole batch handled in one kernel invocation)

LOG2PI = math.log(2.0 * math.pi)


def vae_logprob_kernel(x_ref, eps_ref,
                       ew1, eb1, ew2, eb2, ewh, ebh,
                       dw1, db1, dw2, db2, dwh, dbh,
                       out_ref):
    x = x_ref[...]
    eps = eps_ref[...]

    # ---------------- encoder MLP (ReLU hidden, fused mean|log_sigma head) -----------
    h = jnp.maximum(jnp.dot(x, ew1[...], preferred_element_type=jnp.float32) + eb1[...], 0.0)
    h = jnp.maximum(jnp.dot(h, ew2[...], preferred_element_type=jnp.float32) + eb2[...], 0.0)
    enc_heads = jnp.dot(h, ewh[...], preferred_element_type=jnp.float32) + ebh[...]  # (B, 2L)
    z_mean = enc_heads[:, :L]
    z_log_sigma = enc_heads[:, L:]

    # ---------------- reparameterised sample z ~ q(z|x) = N(z_mean, std) -------------
    std = jnp.exp(z_log_sigma * 0.5)            # EUP
    z = z_mean + std * eps

    # ---------------- KL(q(z|x) || N(0,1)) summed over latent dim --------------------
    # (z - z_mean)/std == eps and log(std) == 0.5 * z_log_sigma, so:
    #   log_qzx - log_pz = 0.5*z^2 - 0.5*eps^2 - 0.5*z_log_sigma
    kl = jnp.sum(0.5 * z * z - 0.5 * eps * eps - 0.5 * z_log_sigma, axis=-1)  # (B,)

    # ---------------- decoder MLP (fused mean|log_scale head) ------------------------
    hd = jnp.maximum(jnp.dot(z, dw1[...], preferred_element_type=jnp.float32) + db1[...], 0.0)
    hd = jnp.maximum(jnp.dot(hd, dw2[...], preferred_element_type=jnp.float32) + db2[...], 0.0)
    dec_heads = jnp.dot(hd, dwh[...], preferred_element_type=jnp.float32) + dbh[...]  # (B, 2D)
    x_prime = dec_heads[:, :D]
    log_scale = dec_heads[:, D:]

    # ---------------- Gaussian reconstruction log-likelihood at target x + 0.5 -------
    # divide -> multiply via inv_scale; log(scale) -> log_scale directly
    inv_scale = jnp.exp(-log_scale)             # EUP
    diff = (x + 0.5 - x_prime) * inv_scale
    log_px = -0.5 * diff * diff - log_scale - 0.5 * LOG2PI
    like = jnp.sum(log_px, axis=-1)                                           # (B,)

    # lane-dense output row (1, B)
    out_ref[...] = (like - kl)[None, :]


def _linear_init(key, fan_in, fan_out):
    kw, kb = jax.random.split(key)
    w = jax.random.normal(kw, (fan_in, fan_out), jnp.float32) / jnp.sqrt(float(fan_in))
    b = 0.01 * jax.random.normal(kb, (1, fan_out), jnp.float32)
    return w, b


def init_params(key):
    keys = jax.random.split(key, 8)
    # encoder: D -> H1 -> H2 -> (L mean head, L log_sigma head)
    enc = [_linear_init(keys[0], D, H1), _linear_init(keys[1], H1, H2),
           _linear_init(keys[2], H2, L), _linear_init(keys[3], H2, L)]
    # decoder: L -> H1 -> H2 -> (D mean head, D log_scale head)
    dec = [_linear_init(keys[4], L, H1), _linear_init(keys[5], H1, H2),
           _linear_init(keys[6], H2, D), _linear_init(keys[7], H2, D)]
    return enc, dec


def vae_log_prob(x, eps, enc, dec):
    (ew1, eb1), (ew2, eb2), (ewm, ebm), (ews, ebs) = enc
    (dw1, db1), (dw2, db2), (dwm, dbm), (dws, dbs) = dec

    # fuse the two encoder heads and the two decoder heads into single wider matmuls
    ewh = jnp.concatenate([ewm, ews], axis=1)   # (H2, 2L)
    ebh = jnp.concatenate([ebm, ebs], axis=1)   # (1, 2L)
    dwh = jnp.concatenate([dwm, dws], axis=1)   # (H2, 2D)
    dbh = jnp.concatenate([dbm, dbs], axis=1)   # (1, 2D)

    params = [ew1, eb1, ew2, eb2, ewh, ebh, dw1, db1, dw2, db2, dwh, dbh]

    # No grid: single invocation; every operand is placed whole in VMEM
    # (tiny working set, << VMEM), no pipelining overhead.
    out = pl.pallas_call(
        vae_logprob_kernel,
        out_shape=jax.ShapeDtypeStruct((1, B), jnp.float32),   # lane-dense row
    )(x, eps, *params)
    return out[0]


def vae_log_prob_ref(x, eps, enc, dec):
    """Pure-JAX reference (unsimplified math, matches the PyTorch module)."""
    (ew1, eb1), (ew2, eb2), (ewm, ebm), (ews, ebs) = enc
    (dw1, db1), (dw2, db2), (dwm, dbm), (dws, dbs) = dec
    hp = jax.lax.Precision.HIGHEST
    h = jnp.maximum(jnp.dot(x, ew1, precision=hp) + eb1, 0.0)
    h = jnp.maximum(jnp.dot(h, ew2, precision=hp) + eb2, 0.0)
    z_mean = jnp.dot(h, ewm, precision=hp) + ebm
    z_log_sigma = jnp.dot(h, ews, precision=hp) + ebs
    std = jnp.exp(z_log_sigma * 0.5)
    z = z_mean + std * eps
    log_qzx = -0.5 * ((z - z_mean) / std) ** 2 - jnp.log(std) - 0.5 * LOG2PI
    log_pz = -0.5 * z * z - 0.5 * LOG2PI
    kl = jnp.sum(log_qzx - log_pz, axis=-1)
    hd = jnp.maximum(jnp.dot(z, dw1, precision=hp) + db1, 0.0)
    hd = jnp.maximum(jnp.dot(hd, dw2, precision=hp) + db2, 0.0)
    x_prime = jnp.dot(hd, dwm, precision=hp) + dbm
    log_scale = jnp.dot(hd, dws, precision=hp) + dbs
    scale = jnp.exp(log_scale)
    log_px = -0.5 * ((x + 0.5 - x_prime) / scale) ** 2 - jnp.log(scale) - 0.5 * LOG2PI
    return jnp.sum(log_px, axis=-1) - kl


if __name__ == "__main__":
    key = jax.random.PRNGKey(0)
    k_param, k_data, k_eps = jax.random.split(key, 3)

    enc, dec = init_params(k_param)
    x = jax.random.normal(k_data, (B, D), jnp.float32)
    # TODO(synk): torch.distributions.Normal.rsample draws its noise internally;
    # here the standard-normal epsilon is drawn host-side and passed into the kernel.
    eps = jax.random.normal(k_eps, (B, L), jnp.float32)

    out = vae_log_prob(x, eps, enc, dec)
    out = jax.block_until_ready(out)

    ref = vae_log_prob_ref(x, eps, enc, dec)
    assert out.shape == (B,)
    assert jnp.allclose(out, ref, rtol=1e-2, atol=1e-2), (out, ref)

    print("KERNEL_OK")
</pallas_src>

<mosaic_0001>
module attributes {stable_mosaic.version = 11 : i64} {
  func.func @vae_logprob_kernel(%arg0: memref<16x16xf32, #tpu.memory_space<vmem>>, %arg1: memref<16x8xf32, #tpu.memory_space<vmem>>, %arg2: memref<16x32xf32, #tpu.memory_space<vmem>>, %arg3: memref<1x32xf32, #tpu.memory_space<vmem>>, %arg4: memref<32x32xf32, #tpu.memory_space<vmem>>, %arg5: memref<1x32xf32, #tpu.memory_space<vmem>>, %arg6: memref<32x16xf32, #tpu.memory_space<vmem>>, %arg7: memref<1x16xf32, #tpu.memory_space<vmem>>, %arg8: memref<8x32xf32, #tpu.memory_space<vmem>>, %arg9: memref<1x32xf32, #tpu.memory_space<vmem>>, %arg10: memref<32x32xf32, #tpu.memory_space<vmem>>, %arg11: memref<1x32xf32, #tpu.memory_space<vmem>>, %arg12: memref<32x32xf32, #tpu.memory_space<vmem>>, %arg13: memref<1x32xf32, #tpu.memory_space<vmem>>, %arg14: memref<1x16xf32, #tpu.memory_space<vmem>>) attributes {dimension_semantics = [], scalar_prefetch = 0 : i64, scratch_operands = 0 : i64, tpu.core_type = #tpu.core_type<tc>} {
    %c0 = arith.constant 0 : index
    %c0_0 = arith.constant 0 : index
    %0 = vector.load %arg0[%c0, %c0_0] : memref<16x16xf32, #tpu.memory_space<vmem>>, vector<16x16xf32>
    %c0_1 = arith.constant 0 : index
    %c0_2 = arith.constant 0 : index
    %1 = vector.load %arg1[%c0_1, %c0_2] : memref<16x8xf32, #tpu.memory_space<vmem>>, vector<16x8xf32>
    %c0_3 = arith.constant 0 : index
    %c0_4 = arith.constant 0 : index
    %2 = vector.load %arg2[%c0_3, %c0_4] : memref<16x32xf32, #tpu.memory_space<vmem>>, vector<16x32xf32>
    %cst = arith.constant dense<0.000000e+00> : vector<16x32xf32>
    %3 = tpu.matmul %0, %2, %cst {dimension_numbers = #tpu.dot_dimension_numbers<[1], [0], [0], [1], [0, 0, 1, 1], [], []>} : vector<16x16xf32>, vector<16x32xf32>, vector<16x32xf32> -> vector<16x32xf32>
    %c0_5 = arith.constant 0 : index
    %c0_6 = arith.constant 0 : index
    %4 = vector.load %arg3[%c0_5, %c0_6] : memref<1x32xf32, #tpu.memory_space<vmem>>, vector<1x32xf32>
    %5 = vector.broadcast %4 : vector<1x32xf32> to vector<16x32xf32>
    %6 = arith.addf %3, %5 : vector<16x32xf32>
    %cst_7 = arith.constant 0.000000e+00 : f32
    %7 = vector.broadcast %cst_7 : f32 to vector<16x32xf32>
    %8 = arith.maximumf %6, %7 : vector<16x32xf32>
    %c0_8 = arith.constant 0 : index
    %c0_9 = arith.constant 0 : index
    %9 = vector.load %arg4[%c0_8, %c0_9] : memref<32x32xf32, #tpu.memory_space<vmem>>, vector<32x32xf32>
    %cst_10 = arith.constant dense<0.000000e+00> : vector<16x32xf32>
    %10 = tpu.matmul %8, %9, %cst_10 {dimension_numbers = #tpu.dot_dimension_numbers<[1], [0], [0], [1], [0, 0, 1, 1], [], []>} : vector<16x32xf32>, vector<32x32xf32>, vector<16x32xf32> -> vector<16x32xf32>
    %c0_11 = arith.constant 0 : index
    %c0_12 = arith.constant 0 : index
    %11 = vector.load %arg5[%c0_11, %c0_12] : memref<1x32xf32, #tpu.memory_space<vmem>>, vector<1x32xf32>
    %12 = vector.broadcast %11 : vector<1x32xf32> to vector<16x32xf32>
    %13 = arith.addf %10, %12 : vector<16x32xf32>
    %cst_13 = arith.constant 0.000000e+00 : f32
    %14 = vector.broadcast %cst_13 : f32 to vector<16x32xf32>
    %15 = arith.maximumf %13, %14 : vector<16x32xf32>
    %c0_14 = arith.constant 0 : index
    %c0_15 = arith.constant 0 : index
    %16 = vector.load %arg6[%c0_14, %c0_15] : memref<32x16xf32, #tpu.memory_space<vmem>>, vector<32x16xf32>
    %cst_16 = arith.constant dense<0.000000e+00> : vector<16x16xf32>
    %17 = tpu.matmul %15, %16, %cst_16 {dimension_numbers = #tpu.dot_dimension_numbers<[1], [0], [0], [1], [0, 0, 1, 1], [], []>} : vector<16x32xf32>, vector<32x16xf32>, vector<16x16xf32> -> vector<16x16xf32>
    %c0_17 = arith.constant 0 : index
    %c0_18 = arith.constant 0 : index
    %18 = vector.load %arg7[%c0_17, %c0_18] : memref<1x16xf32, #tpu.memory_space<vmem>>, vector<1x16xf32>
    %19 = vector.broadcast %18 : vector<1x16xf32> to vector<16x16xf32>
    %20 = arith.addf %17, %19 : vector<16x16xf32>
    %21 = vector.extract_strided_slice %20 {offsets = [0, 0], sizes = [16, 8], strides = [1, 1]} : vector<16x16xf32> to vector<16x8xf32>
    %22 = vector.extract_strided_slice %20 {offsets = [0, 8], sizes = [16, 8], strides = [1, 1]} : vector<16x16xf32> to vector<16x8xf32>
    %cst_19 = arith.constant 5.000000e-01 : f32
    %23 = vector.broadcast %cst_19 : f32 to vector<16x8xf32>
    %24 = arith.mulf %22, %23 : vector<16x8xf32>
    %25 = math.exp %24 : vector<16x8xf32>
    %26 = arith.mulf %25, %1 : vector<16x8xf32>
    %27 = arith.addf %21, %26 : vector<16x8xf32>
    %cst_20 = arith.constant 5.000000e-01 : f32
    %28 = vector.broadcast %cst_20 : f32 to vector<16x8xf32>
    %29 = arith.mulf %28, %27 : vector<16x8xf32>
    %30 = arith.mulf %29, %27 : vector<16x8xf32>
    %cst_21 = arith.constant 5.000000e-01 : f32
    %31 = vector.broadcast %cst_21 : f32 to vector<16x8xf32>
    %32 = arith.mulf %31, %1 : vector<16x8xf32>
    %33 = arith.mulf %32, %1 : vector<16x8xf32>
    %34 = arith.subf %30, %33 : vector<16x8xf32>
    %cst_22 = arith.constant 5.000000e-01 : f32
    %35 = vector.broadcast %cst_22 : f32 to vector<16x8xf32>
    %36 = arith.mulf %35, %22 : vector<16x8xf32>
    %37 = arith.subf %34, %36 : vector<16x8xf32>
    %cst_23 = arith.constant dense<0.000000e+00> : vector<16xf32>
    %38 = vector.multi_reduction <add>, %37, %cst_23 [1] : vector<16x8xf32> to vector<16xf32>
    %c0_24 = arith.constant 0 : index
    %c0_25 = arith.constant 0 : index
    %39 = vector.load %arg8[%c0_24, %c0_25] : memref<8x32xf32, #tpu.memory_space<vmem>>, vector<8x32xf32>
    %cst_26 = arith.constant dense<0.000000e+00> : vector<16x32xf32>
    %40 = tpu.matmul %27, %39, %cst_26 {dimension_numbers = #tpu.dot_dimension_numbers<[1], [0], [0], [1], [0, 0, 1, 1], [], []>} : vector<16x8xf32>, vector<8x32xf32>, vector<16x32xf32> -> vector<16x32xf32>
    %c0_27 = arith.constant 0 : index
    %c0_28 = arith.constant 0 : index
    %41 = vector.load %arg9[%c0_27, %c0_28] : memref<1x32xf32, #tpu.memory_space<vmem>>, vector<1x32xf32>
    %42 = vector.broadcast %41 : vector<1x32xf32> to vector<16x32xf32>
    %43 = arith.addf %40, %42 : vector<16x32xf32>
    %cst_29 = arith.constant 0.000000e+00 : f32
    %44 = vector.broadcast %cst_29 : f32 to vector<16x32xf32>
    %45 = arith.maximumf %43, %44 : vector<16x32xf32>
    %c0_30 = arith.constant 0 : index
    %c0_31 = arith.constant 0 : index
    %46 = vector.load %arg10[%c0_30, %c0_31] : memref<32x32xf32, #tpu.memory_space<vmem>>, vector<32x32xf32>
    %cst_32 = arith.constant dense<0.000000e+00> : vector<16x32xf32>
    %47 = tpu.matmul %45, %46, %cst_32 {dimension_numbers = #tpu.dot_dimension_numbers<[1], [0], [0], [1], [0, 0, 1, 1], [], []>} : vector<16x32xf32>, vector<32x32xf32>, vector<16x32xf32> -> vector<16x32xf32>
    %c0_33 = arith.constant 0 : index
    %c0_34 = arith.constant 0 : index
    %48 = vector.load %arg11[%c0_33, %c0_34] : memref<1x32xf32, #tpu.memory_space<vmem>>, vector<1x32xf32>
    %49 = vector.broadcast %48 : vector<1x32xf32> to vector<16x32xf32>
    %50 = arith.addf %47, %49 : vector<16x32xf32>
    %cst_35 = arith.constant 0.000000e+00 : f32
    %51 = vector.broadcast %cst_35 : f32 to vector<16x32xf32>
    %52 = arith.maximumf %50, %51 : vector<16x32xf32>
    %c0_36 = arith.constant 0 : index
    %c0_37 = arith.constant 0 : index
    %53 = vector.load %arg12[%c0_36, %c0_37] : memref<32x32xf32, #tpu.memory_space<vmem>>, vector<32x32xf32>
    %cst_38 = arith.constant dense<0.000000e+00> : vector<16x32xf32>
    %54 = tpu.matmul %52, %53, %cst_38 {dimension_numbers = #tpu.dot_dimension_numbers<[1], [0], [0], [1], [0, 0, 1, 1], [], []>} : vector<16x32xf32>, vector<32x32xf32>, vector<16x32xf32> -> vector<16x32xf32>
    %c0_39 = arith.constant 0 : index
    %c0_40 = arith.constant 0 : index
    %55 = vector.load %arg13[%c0_39, %c0_40] : memref<1x32xf32, #tpu.memory_space<vmem>>, vector<1x32xf32>
    %56 = vector.broadcast %55 : vector<1x32xf32> to vector<16x32xf32>
    %57 = arith.addf %54, %56 : vector<16x32xf32>
    %58 = vector.extract_strided_slice %57 {offsets = [0, 0], sizes = [16, 16], strides = [1, 1]} : vector<16x32xf32> to vector<16x16xf32>
    %59 = vector.extract_strided_slice %57 {offsets = [0, 16], sizes = [16, 16], strides = [1, 1]} : vector<16x32xf32> to vector<16x16xf32>
    %cst_41 = arith.constant 0.000000e+00 : f32
    %60 = vector.broadcast %cst_41 : f32 to vector<16x16xf32>
    %61 = arith.subf %60, %59 : vector<16x16xf32>
    %62 = math.exp %61 : vector<16x16xf32>
    %cst_42 = arith.constant 5.000000e-01 : f32
    %63 = vector.broadcast %cst_42 : f32 to vector<16x16xf32>
    %64 = arith.addf %0, %63 : vector<16x16xf32>
    %65 = arith.subf %64, %58 : vector<16x16xf32>
    %66 = arith.mulf %65, %62 : vector<16x16xf32>
    %cst_43 = arith.constant -5.000000e-01 : f32
    %67 = vector.broadcast %cst_43 : f32 to vector<16x16xf32>
    %68 = arith.mulf %67, %66 : vector<16x16xf32>
    %69 = arith.mulf %68, %66 : vector<16x16xf32>
    %70 = arith.subf %69, %59 : vector<16x16xf32>
    %cst_44 = arith.constant 0.918938517 : f32
    %71 = vector.broadcast %cst_44 : f32 to vector<16x16xf32>
    %72 = arith.subf %70, %71 : vector<16x16xf32>
    %cst_45 = arith.constant dense<0.000000e+00> : vector<16xf32>
    %73 = vector.multi_reduction <add>, %72, %cst_45 [1] : vector<16x16xf32> to vector<16xf32>
    %74 = arith.subf %73, %38 : vector<16xf32>
    %75 = vector.shape_cast %74 : vector<16xf32> to vector<1x16xf32>
    %c0_46 = arith.constant 0 : index
    %c0_47 = arith.constant 0 : index
    %76 = vector.load %arg14[%c0_46, %c0_47] : memref<1x16xf32, #tpu.memory_space<vmem>>, vector<1x16xf32>
    tpu.vector_store %arg14[%c0_46, %c0_47], %75 {strides = array<i32>} : memref<1x16xf32, #tpu.memory_space<vmem>>, vector<1x16xf32>,
    return
  }
}

</mosaic_0001>

<llo_original>
// kernel: tpu_custom_call.1
$region0: #{tpu_custom_call.1}
  #allocation0 [shape = 'u32[]', space=smem, size = 0x4, offset = 0x4, fixed_abs, tag = 'smem constant byte address 0x4 - core index']
  #allocation1 [shape = 'u32[144,128]{1,0:T(1,128)}', space=vmem, size = 0x12000, scoped, tag = 'internal scratch']
  %s0 = inlined_call_operand.hbm [shape: f32[16,16], index: 0, kind: input, shape index: {}]
  %s1 = inlined_call_operand.vmem [shape: f32[16,8], index: 1, kind: input, shape index: {}]
  %s2 = inlined_call_operand.hbm [shape: f32[16,32], index: 2, kind: input, shape index: {}]
  %s3 = inlined_call_operand.vmem [shape: f32[1,32], index: 3, kind: input, shape index: {}]
  %s4 = inlined_call_operand.vmem [shape: f32[32,32], index: 4, kind: input, shape index: {}]
  %s5 = inlined_call_operand.vmem [shape: f32[1,32], index: 5, kind: input, shape index: {}]
  %s6 = inlined_call_operand.vmem [shape: f32[32,16], index: 6, kind: input, shape index: {}]
  %s7 = inlined_call_operand.hbm [shape: f32[1,16], index: 7, kind: input, shape index: {}]
  %s8 = inlined_call_operand.hbm [shape: f32[8,32], index: 8, kind: input, shape index: {}]
  %s9 = inlined_call_operand.vmem [shape: f32[1,32], index: 9, kind: input, shape index: {}]
  %s10 = inlined_call_operand.vmem [shape: f32[32,32], index: 10, kind: input, shape index: {}]
  %s11 = inlined_call_operand.vmem [shape: f32[1,32], index: 11, kind: input, shape index: {}]
  %s12 = inlined_call_operand.vmem [shape: f32[32,32], index: 12, kind: input, shape index: {}]
  %s13 = inlined_call_operand.vmem [shape: f32[1,32], index: 13, kind: input, shape index: {}]
  %s14 = inlined_call_operand.hbm [shape: f32[1,16], index: 14, kind: output, shape index: {}]
  %s15 = sld [smem:[#allocation0]]
  $region82: #{tpu_custom_call.1} parent=0
    _
  %s17 = ssub.s32 1, %s15
  %s18 = scalar_select 0, %s17, %s15
  $region1: #{tpu_custom_call.1} parent=0
    #allocation2 [shape = 'u8[8192]{0}', space=vmem, size = 0x2000, scoped, tag = 'input window, operand 0, single buffered']
    #allocation3 [shape = 's32[1]{0}', space=sflag, size = 0x4, scoped, tag = 'scoped memory for tpu_custom_call.1']
    #allocation4 [shape = 's32[1]{0}', space=sflag, size = 0x4, scoped, tag = 'scoped memory for tpu_custom_call.1']
    #allocation5 [shape = 'u8[8192]{0}', space=vmem, size = 0x2000, scoped, tag = 'input window, operand 2, single buffered']
    #allocation6 [shape = 's32[1]{0}', space=sflag, size = 0x4, scoped, tag = 'scoped memory for tpu_custom_call.1']
    #allocation7 [shape = 'u8[512]{0}', space=vmem, size = 0x400, scoped, tag = 'input window, operand 7, single buffered']
    #allocation8 [shape = 'u8[4096]{0}', space=vmem, size = 0x1000, scoped, tag = 'input window, operand 8, single buffered']
    #allocation9 [shape = 's32[1]{0}', space=sflag, size = 0x4, scoped, tag = 'scoped memory for tpu_custom_call.1']
    #allocation10 [shape = 'u8[512]{0}', space=vmem, size = 0x400, scoped, tag = 'output window, operand 0, single buffered']
    %19 = vsyncpa [#allocation3], 0
    %20 = vsyncpa [#allocation6], 0
    %21 = vsyncpa [#allocation9], 0
    %22 = vsyncpa [#allocation4], 0
    // Predicated region
    $region2: #{tpu_custom_call.1} parent=1 // pred_check
      _
    $region3: #{tpu_custom_call.1} parent=1 // pred_check_branch
      %24 = sbr.rel (0) target = $region5
    $region4: #{tpu_custom_call.1} parent=1 // pred_region
      %s26 = ssub.s32 256, 256
      %27 = vsyncadd [#allocation3], %s26
      %s28 = sshll.u32 [#allocation2], 4
      %s29 = int_to_ptr.vmem [resolvable:$true] %s28
      %34 = dma.hbm_to_vmem [thread:$0]  %s0, 256, %s29, [#allocation3], 128, 128, 8
    $region5: #{tpu_custom_call.1} parent=1 // pred_fallthru
      _
    // Predicated region
    $region6: #{tpu_custom_call.1} parent=1 // pred_check
      _
    $region7: #{tpu_custom_call.1} parent=1 // pred_check_branch
      %36 = sbr.rel (0) target = $region9
    $region8: #{tpu_custom_call.1} parent=1 // pred_region
      _
    $region9: #{tpu_custom_call.1} parent=1 // pred_fallthru
      _
    // Predicated region
    $region10: #{tpu_custom_call.1} parent=1 // pred_check
      _
    $region11: #{tpu_custom_call.1} parent=1 // pred_check_branch
      %38 = sbr.rel (0) target = $region13
    $region12: #{tpu_custom_call.1} parent=1 // pred_region
      %s40 = ssub.s32 256, 256
      %41 = vsyncadd [#allocation6], %s40
      %s42 = sshll.u32 [#allocation5], 4
      %s43 = int_to_ptr.vmem [resolvable:$true] %s42
      %48 = dma.hbm_to_vmem [thread:$0]  %s2, 256, %s43, [#allocation6], 128, 128, 8
    $region13: #{tpu_custom_call.1} parent=1 // pred_fallthru
      _
    // Predicated region
    $region14: #{tpu_custom_call.1} parent=1 // pred_check
      _
    $region15: #{tpu_custom_call.1} parent=1 // pred_check_branch
      %50 = sbr.rel (0) target = $region17
    $region16: #{tpu_custom_call.1} parent=1 // pred_region
      _
    $region17: #{tpu_custom_call.1} parent=1 // pred_fallthru
      _
    // Predicated region
    $region18: #{tpu_custom_call.1} parent=1 // pred_check
      _
    $region19: #{tpu_custom_call.1} parent=1 // pred_check_branch
      %52 = sbr.rel (0) target = $region21
    $region20: #{tpu_custom_call.1} parent=1 // pred_region
      _
    $region21: #{tpu_custom_call.1} parent=1 // pred_fallthru
      _
    // Predicated region
    $region22: #{tpu_custom_call.1} parent=1 // pred_check
      _
    $region23: #{tpu_custom_call.1} parent=1 // pred_check_branch
      %54 = sbr.rel (0) target = $region25
    $region24: #{tpu_custom_call.1} parent=1 // pred_region
      _
    $region25: #{tpu_custom_call.1} parent=1 // pred_fallthru
      _
    // Predicated region
    $region26: #{tpu_custom_call.1} parent=1 // pred_check
      _
    $region27: #{tpu_custom_call.1} parent=1 // pred_check_branch
      %56 = sbr.rel (0) target = $region29
    $region28: #{tpu_custom_call.1} parent=1 // pred_region
      _
    $region29: #{tpu_custom_call.1} parent=1 // pred_fallthru
      _
    // Predicated region
    $region30: #{tpu_custom_call.1} parent=1 // pred_check
      _
    $region31: #{tpu_custom_call.1} parent=1 // pred_check_branch
      %58 = sbr.rel (0) target = $region33
    $region32: #{tpu_custom_call.1} parent=1 // pred_region
      %s60 = ssub.s32 16, 16
      %61 = vsyncadd [#allocation6], %s60
      %s63 = sshll.u32 [#allocation7], 4
      %s64 = int_to_ptr.vmem [resolvable:$true] %s63
      %66 = dma.hbm_to_vmem [thread:$0]  %s7, 16, %s64, [#allocation6]
    $region33: #{tpu_custom_call.1} parent=1 // pred_fallthru
      _
    // Predicated region
    $region34: #{tpu_custom_call.1} parent=1 // pred_check
      _
    $region35: #{tpu_custom_call.1} parent=1 // pred_check_branch
      %68 = sbr.rel (0) target = $region37
    $region36: #{tpu_custom_call.1} parent=1 // pred_region
      %s70 = ssub.s32 128, 128
      %71 = vsyncadd [#allocation9], %s70
      %s73 = sshll.u32 [#allocation8], 4
      %s74 = int_to_ptr.vmem [resolvable:$true] %s73
      %76 = dma.hbm_to_vmem [thread:$0]  %s8, 128, %s74, [#allocation9]
    $region37: #{tpu_custom_call.1} parent=1 // pred_fallthru
      _
    // Predicated region
    $region38: #{tpu_custom_call.1} parent=1 // pred_check
      _
    $region39: #{tpu_custom_call.1} parent=1 // pred_check_branch
      %78 = sbr.rel (0) target = $region41
    $region40: #{tpu_custom_call.1} parent=1 // pred_region
      _
    $region41: #{tpu_custom_call.1} parent=1 // pred_fallthru
      _
    // Predicated region
    $region42: #{tpu_custom_call.1} parent=1 // pred_check
      _
    $region43: #{tpu_custom_call.1} parent=1 // pred_check_branch
      %80 = sbr.rel (0) target = $region45
    $region44: #{tpu_custom_call.1} parent=1 // pred_region
      _
    $region45: #{tpu_custom_call.1} parent=1 // pred_fallthru
      _
    // Predicated region
    $region46: #{tpu_custom_call.1} parent=1 // pred_check
      _
    $region47: #{tpu_custom_call.1} parent=1 // pred_check_branch
      %82 = sbr.rel (0) target = $region49
    $region48: #{tpu_custom_call.1} parent=1 // pred_region
      _
    $region49: #{tpu_custom_call.1} parent=1 // pred_fallthru
      _
    // Predicated region
    $region50: #{tpu_custom_call.1} parent=1 // pred_check
      _
    $region51: #{tpu_custom_call.1} parent=1 // pred_check_branch
      %84 = sbr.rel (0) target = $region53
    $region52: #{tpu_custom_call.1} parent=1 // pred_region
      _
    $region53: #{tpu_custom_call.1} parent=1 // pred_fallthru
      _
    // Predicated region
    $region54: #{tpu_custom_call.1} parent=1 // pred_check
      _
    $region55: #{tpu_custom_call.1} parent=1 // pred_check_branch
      %86 = sbr.rel (0) target = $region57
    $region56: #{tpu_custom_call.1} parent=1 // pred_region
      _
    $region57: #{tpu_custom_call.1} parent=1 // pred_fallthru
      _
    // Predicated region
    $region58: #{tpu_custom_call.1} parent=1 // pred_check
      _
    $region59: #{tpu_custom_call.1} parent=1 // pred_check_branch
      %88 = sbr.rel (0) target = $region61
    $region60: #{tpu_custom_call.1} parent=1 // pred_region
      %89 = dma.done [#allocation3], 256
    $region61: #{tpu_custom_call.1} parent=1 // pred_fallthru
      _
    // Predicated region
    $region62: #{tpu_custom_call.1} parent=1 // pred_check
      _
    $region63: #{tpu_custom_call.1} parent=1 // pred_check_branch
      %91 = sbr.rel (0) target = $region65
    $region64: #{tpu_custom_call.1} parent=1 // pred_region
      %92 = dma.done [#allocation6], 256
    $region65: #{tpu_custom_call.1} parent=1 // pred_fallthru
      _
    // Predicated region
    $region66: #{tpu_custom_call.1} parent=1 // pred_check
      _
    $region67: #{tpu_custom_call.1} parent=1 // pred_check_branch
      %94 = sbr.rel (0) target = $region69
    $region68: #{tpu_custom_call.1} parent=1 // pred_region
      %95 = dma.done [#allocation6], 16
    $region69: #{tpu_custom_call.1} parent=1 // pred_fallthru
      _
    // Predicated region
    $region70: #{tpu_custom_call.1} parent=1 // pred_check
      _
    $region71: #{tpu_custom_call.1} parent=1 // pred_check_branch
      %97 = sbr.rel (0) target = $region73
    $region72: #{tpu_custom_call.1} parent=1 // pred_region
      %98 = dma.done [#allocation9], 128
    $region73: #{tpu_custom_call.1} parent=1 // pred_fallthru
      _
    %v99 = vld [vmem:[#allocation2] sm:$0xff]
    %v100 = vld [vmem:[#allocation2 + $0x8] sm:$0xff]
    %v101 = vld [vmem:[%s1] sm:$0xff]
    %v102 = vld [vmem:[%s1 + $0x8] sm:$0xff]
    %v103 = vld [vmem:[#allocation5] sm:$0xff]
    %v104 = vld [vmem:[#allocation5 + $0x8] sm:$0xff]
    %v105 = vld [vmem:[%s3] sm:$0x1]
    %v107 = vlaneseq
    %v108 = vshrl.u32 %v107, 7
    %v109 = vsub.s32 0, %v108
    %v110 = vrot.slane %v105, %v109
    %vm112 = vcmask 130048
    %v114 = vsel %vm112, %v99, 0
    %v117 = vsel %vm112, %v100, 0
    %119 = vmatprep.subr.mxu0 0.0
    %120 = vmatpush1.msra.mxu0 %v103
    %121 = vmatprep.subr.mxu0 0.0
    %122 = vmatpush1.msra.mxu0 %v104
    %123 = vmatprep.subr.mxu0 0.0
    %124 = vmatpush1.msra.mxu0 0.0
    %125 = vmatprep.subr.mxu0 0.0
    %126 = vmatpush1.msra.mxu0 0.0
    %127 = vmatprep.subr.mxu0 0.0
    %128 = vmatpush1.msra.mxu0 0.0
    %129 = vmatprep.subr.mxu0 0.0
    %130 = vmatpush1.msra.mxu0 0.0
    %131 = vmatprep.subr.mxu0 0.0
    %132 = vmatpush1.msra.mxu0 0.0
    %133 = vmatprep.subr.mxu0 0.0
    %134 = vmatpush1.msra.mxu0 0.0
    %135 = vmatprep.subr.mxu0 0.0
    %136 = vmatpush1.msra.mxu0 0.0
    %137 = vmatprep.subr.mxu0 0.0
    %138 = vmatpush1.msra.mxu0 0.0
    %139 = vmatprep.subr.mxu0 0.0
    %140 = vmatpush1.msra.mxu0 0.0
    %141 = vmatprep.subr.mxu0 0.0
    %142 = vmatpush1.msra.mxu0 0.0
    %143 = vmatprep.subr.mxu0 0.0
    %144 = vmatpush1.msra.mxu0 0.0
    %145 = vmatprep.subr.mxu0 0.0
    %146 = vmatpush1.msra.mxu0 0.0
    %147 = vmatprep.subr.mxu0 0.0
    %148 = vmatpush1.msra.mxu0 0.0
    %149 = vmatprep.subr.mxu0 0.0
    %150 = vmatpush1.msra.mxu0 0.0
    %151 = vmatprep.subr.mxu0 0.0
    %152 = vmatpush1.msra.mxu0 0.0
    %153 = vmatprep.subr.mxu0 0.0
    %154 = vmatpush1.msra.mxu0 0.0
    %155 = vmatprep.subr.mxu0 0.0
    %156 = vmatpush1.msra.mxu0 0.0
    %157 = vmatprep.subr.mxu0 0.0
    %158 = vmatpush1.msra.mxu0 0.0
    %159 = vmatprep.subr.mxu0 0.0
    %160 = vmatpush1.msra.mxu0 0.0
    %161 = vmatprep.subr.mxu0 0.0
    %162 = vmatpush1.msra.mxu0 0.0
    %163 = vmatprep.subr.mxu0 0.0
    %164 = vmatpush1.msra.mxu0 0.0
    %165 = vmatprep.subr.mxu0 0.0
    %166 = vmatpush1.msra.mxu0 0.0
    %167 = vmatprep.subr.mxu0 0.0
    %168 = vmatpush1.msra.mxu0 0.0
    %169 = vmatprep.subr.mxu0 0.0
    %170 = vmatpush1.msra.mxu0 0.0
    %171 = vmatprep.subr.mxu0 0.0
    %172 = vmatpush1.msra.mxu0 0.0
    %173 = vmatprep.subr.mxu0 0.0
    %174 = vmatpush1.msra.mxu0 0.0
    %175 = vmatprep.subr.mxu0 0.0
    %176 = vmatpush1.msra.mxu0 0.0
    %177 = vmatprep.subr.mxu0 0.0
    %178 = vmatpush1.msra.mxu0 0.0
    %179 = vmatprep.subr.mxu0 0.0
    %180 = vmatpush1.msra.mxu0 0.0
    %181 = vmatprep.subr.mxu0 0.0
    %182 = vmatpush1.msra.mxu0 0.0
    %183 = vmatprep.mubr.f32.mxu0 0.0
    %184 = vmatmul.mubr.f32.gmra.mrb[0].mxu0 %v114
    %v185 = vpop.f32.mrb[0].mxu0
    %v186 = vadd.f32 %v110, %v185
    %v187 = vpop.f32.mrb[0].mxu0
    %188 = vmatprep.mubr.f32.mxu0 0.0
    %189 = vmatmul.mubr.f32.gmra.mrb[0].mxu0 %v117
    %v190 = vpop.f32.mrb[0].mxu0
    %v191 = vadd.f32 %v110, %v190
    %v192 = vpop.f32.mrb[0].mxu0
    %193 = vdwg.mxu0
    %v194 = vmax.f32 %v186, 0.0
    %v195 = vmax.f32 %v191, 0.0
    %v196 = vld [vmem:[%s4] sm:$0xff]
    %v197 = vld [vmem:[%s4 + $0x8] sm:$0xff]
    %v198 = vld [vmem:[%s4 + $0x10] sm:$0xff]
    %v199 = vld [vmem:[%s4 + $0x18] sm:$0xff]
    %v200 = vld [vmem:[%s5] sm:$0x1]
    %v202 = vlaneseq
    %v203 = vshrl.u32 %v202, 7
    %v204 = vsub.s32 0, %v203
    %v205 = vrot.slane %v200, %v204
    %vm207 = vcmask 261120
    %v209 = vsel %vm207, %v194, 0
    %v212 = vsel %vm207, %v195, 0
    %214 = vmatprep.subr.mxu0 0.0
    %215 = vmatpush1.msra.mxu0 %v196
    %216 = vmatprep.subr.mxu0 0.0
    %217 = vmatpush1.msra.mxu0 %v197
    %218 = vmatprep.subr.mxu0 0.0
    %219 = vmatpush1.msra.mxu0 %v198
    %220 = vmatprep.subr.mxu0 0.0
    %221 = vmatpush1.msra.mxu0 %v199
    %222 = vmatprep.subr.mxu0 0.0
    %223 = vmatpush1.msra.mxu0 0.0
    %224 = vmatprep.subr.mxu0 0.0
    %225 = vmatpush1.msra.mxu0 0.0
    %226 = vmatprep.subr.mxu0 0.0
    %227 = vmatpush1.msra.mxu0 0.0
    %228 = vmatprep.subr.mxu0 0.0
    %229 = vmatpush1.msra.mxu0 0.0
    %230 = vmatprep.subr.mxu0 0.0
    %231 = vmatpush1.msra.mxu0 0.0
    %232 = vmatprep.subr.mxu0 0.0
    %233 = vmatpush1.msra.mxu0 0.0
    %234 = vmatprep.subr.mxu0 0.0
    %235 = vmatpush1.msra.mxu0 0.0
    %236 = vmatprep.subr.mxu0 0.0
    %237 = vmatpush1.msra.mxu0 0.0
    %238 = vmatprep.subr.mxu0 0.0
    %239 = vmatpush1.msra.mxu0 0.0
    %240 = vmatprep.subr.mxu0 0.0
    %241 = vmatpush1.msra.mxu0 0.0
    %242 = vmatprep.subr.mxu0 0.0
    %243 = vmatpush1.msra.mxu0 0.0
    %244 = vmatprep.subr.mxu0 0.0
    %245 = vmatpush1.msra.mxu0 0.0
    %246 = vmatprep.subr.mxu0 0.0
    %247 = vmatpush1.msra.mxu0 0.0
    %248 = vmatprep.subr.mxu0 0.0
    %249 = vmatpush1.msra.mxu0 0.0
    %250 = vmatprep.subr.mxu0 0.0
    %251 = vmatpush1.msra.mxu0 0.0
    %252 = vmatprep.subr.mxu0 0.0
    %253 = vmatpush1.msra.mxu0 0.0
    %254 = vmatprep.subr.mxu0 0.0
    %255 = vmatpush1.msra.mxu0 0.0
    %256 = vmatprep.subr.mxu0 0.0
    %257 = vmatpush1.msra.mxu0 0.0
    %258 = vmatprep.subr.mxu0 0.0
    %259 = vmatpush1.msra.mxu0 0.0
    %260 = vmatprep.subr.mxu0 0.0
    %261 = vmatpush1.msra.mxu0 0.0
    %262 = vmatprep.subr.mxu0 0.0
    %263 = vmatpush1.msra.mxu0 0.0
    %264 = vmatprep.subr.mxu0 0.0
    %265 = vmatpush1.msra.mxu0 0.0
    %266 = vmatprep.subr.mxu0 0.0
    %267 = vmatpush1.msra.mxu0 0.0
    %268 = vmatprep.subr.mxu0 0.0
    %269 = vmatpush1.msra.mxu0 0.0
    %270 = vmatprep.subr.mxu0 0.0
    %271 = vmatpush1.msra.mxu0 0.0
    %272 = vmatprep.subr.mxu0 0.0
    %273 = vmatpush1.msra.mxu0 0.0
    %274 = vmatprep.subr.mxu0 0.0
    %275 = vmatpush1.msra.mxu0 0.0
    %276 = vmatprep.subr.mxu0 0.0
    %277 = vmatpush1.msra.mxu0 0.0
    %278 = vmatprep.mubr.f32.mxu0 0.0
    %279 = vmatmul.mubr.f32.gmra.mrb[0].mxu0 %v209
    %v280 = vpop.f32.mrb[0].mxu0
    %v281 = vadd.f32 %v205, %v280
    %v282 = vpop.f32.mrb[0].mxu0
    %283 = vmatprep.mubr.f32.mxu0 0.0
    %284 = vmatmul.mubr.f32.gmra.mrb[0].mxu0 %v212
    %v285 = vpop.f32.mrb[0].mxu0
    %v286 = vadd.f32 %v205, %v285
    %v287 = vpop.f32.mrb[0].mxu0
    %288 = vdwg.mxu0
    %v289 = vmax.f32 %v281, 0.0
    %v290 = vmax.f32 %v286, 0.0
    %v291 = vld [vmem:[%s6] sm:$0xff]
    %v292 = vld [vmem:[%s6 + $0x8] sm:$0xff]
    %v293 = vld [vmem:[%s6 + $0x10] sm:$0xff]
    %v294 = vld [vmem:[%s6 + $0x18] sm:$0xff]
    %v295 = vld [vmem:[#allocation7] sm:$0x1]
    %v297 = vlaneseq
    %v298 = vshrl.u32 %v297, 7
    %v299 = vsub.s32 0, %v298
    %v300 = vrot.slane %v295, %v299
    %v303 = vsel %vm207, %v289, 0
    %v306 = vsel %vm207, %v290, 0
    %308 = vmatprep.subr.mxu0 0.0
    %309 = vmatpush1.msra.mxu0 %v291
    %310 = vmatprep.subr.mxu0 0.0
    %311 = vmatpush1.msra.mxu0 %v292
    %312 = vmatprep.subr.mxu0 0.0
    %313 = vmatpush1.msra.mxu0 %v293
    %314 = vmatprep.subr.mxu0 0.0
    %315 = vmatpush1.msra.mxu0 %v294
    %316 = vmatprep.subr.mxu0 0.0
    %317 = vmatpush1.msra.mxu0 0.0
    %318 = vmatprep.subr.mxu0 0.0
    %319 = vmatpush1.msra.mxu0 0.0
    %320 = vmatprep.subr.mxu0 0.0
    %321 = vmatpush1.msra.mxu0 0.0
    %322 = vmatprep.subr.mxu0 0.0
    %323 = vmatpush1.msra.mxu0 0.0
    %324 = vmatprep.subr.mxu0 0.0
    %325 = vmatpush1.msra.mxu0 0.0
    %326 = vmatprep.subr.mxu0 0.0
    %327 = vmatpush1.msra.mxu0 0.0
    %328 = vmatprep.subr.mxu0 0.0
    %329 = vmatpush1.msra.mxu0 0.0
    %330 = vmatprep.subr.mxu0 0.0
    %331 = vmatpush1.msra.mxu0 0.0
    %332 = vmatprep.subr.mxu0 0.0
    %333 = vmatpush1.msra.mxu0 0.0
    %334 = vmatprep.subr.mxu0 0.0
    %335 = vmatpush1.msra.mxu0 0.0
    %336 = vmatprep.subr.mxu0 0.0
    %337 = vmatpush1.msra.mxu0 0.0
    %338 = vmatprep.subr.mxu0 0.0
    %339 = vmatpush1.msra.mxu0 0.0
    %340 = vmatprep.subr.mxu0 0.0
    %341 = vmatpush1.msra.mxu0 0.0
    %342 = vmatprep.subr.mxu0 0.0
    %343 = vmatpush1.msra.mxu0 0.0
    %344 = vmatprep.subr.mxu0 0.0
    %345 = vmatpush1.msra.mxu0 0.0
    %346 = vmatprep.subr.mxu0 0.0
    %347 = vmatpush1.msra.mxu0 0.0
    %348 = vmatprep.subr.mxu0 0.0
    %349 = vmatpush1.msra.mxu0 0.0
    %350 = vmatprep.subr.mxu0 0.0
    %351 = vmatpush1.msra.mxu0 0.0
    %352 = vmatprep.subr.mxu0 0.0
    %353 = vmatpush1.msra.mxu0 0.0
    %354 = vmatprep.subr.mxu0 0.0
    %355 = vmatpush1.msra.mxu0 0.0
    %356 = vmatprep.subr.mxu0 0.0
    %357 = vmatpush1.msra.mxu0 0.0
    %358 = vmatprep.subr.mxu0 0.0
    %359 = vmatpush1.msra.mxu0 0.0
    %360 = vmatprep.subr.mxu0 0.0
    %361 = vmatpush1.msra.mxu0 0.0
    %362 = vmatprep.subr.mxu0 0.0
    %363 = vmatpush1.msra.mxu0 0.0
    %364 = vmatprep.subr.mxu0 0.0
    %365 = vmatpush1.msra.mxu0 0.0
    %366 = vmatprep.subr.mxu0 0.0
    %367 = vmatpush1.msra.mxu0 0.0
    %368 = vmatprep.subr.mxu0 0.0
    %369 = vmatpush1.msra.mxu0 0.0
    %370 = vmatprep.subr.mxu0 0.0
    %371 = vmatpush1.msra.mxu0 0.0
    %372 = vmatprep.mubr.f32.mxu0 0.0
    %373 = vmatmul.mubr.f32.gmra.mrb[0].mxu0 %v303
    %v374 = vpop.f32.mrb[0].mxu0
    %v375 = vadd.f32 %v300, %v374
    %v376 = vpop.f32.mrb[0].mxu0
    %377 = vmatprep.mubr.f32.mxu0 0.0
    %378 = vmatmul.mubr.f32.gmra.mrb[0].mxu0 %v306
    %v379 = vpop.f32.mrb[0].mxu0
    %v380 = vadd.f32 %v300, %v379
    %v381 = vpop.f32.mrb[0].mxu0
    %382 = vdwg.mxu0
    %v383 = vmul.f32 %v375, 0.5
    %v384 = vmul.f32 %v380, 0.5
    %v385 = vmul.f32 %v383, 1.442695
    %v386 = vpow.pop %v385
    %v387 = vmul.f32 %v384, 1.442695
    %v388 = vpow.pop %v387
    %391 = vrot.lane.b32.xlu0 %v101, 8
    %v392 = vpop.permute.xlu0 %391
    %393 = vrot.lane.b32.xlu0 %v102, 8
    %v394 = vpop.permute.xlu0 %393
    %v397 = vmul.f32 %v386, %v392
    %v398 = vmul.f32 %v388, %v394
    %401 = vrot.lane.b32.xlu0 %v397, 120
    %v402 = vpop.permute.xlu0 %401
    %403 = vrot.lane.b32.xlu0 %v398, 120
    %v404 = vpop.permute.xlu0 %403
    %v407 = vadd.f32 %v375, %v402
    %v408 = vadd.f32 %v380, %v404
    %v409 = vmul.f32 %v407, 0.5
    %v410 = vmul.f32 %v408, 0.5
    %v411 = vmul.f32 %v409, %v407
    %v412 = vmul.f32 %v410, %v408
    %v413 = vmul.f32 %v101, 0.5
    %v414 = vmul.f32 %v102, 0.5
    %v415 = vmul.f32 %v413, %v101
    %v416 = vmul.f32 %v414, %v102
    %v417 = vsub.f32 %v411, %v415
    %v418 = vsub.f32 %v412, %v416
    %421 = vrot.lane.b32.xlu0 %v383, 120
    %v422 = vpop.permute.xlu0 %421
    %423 = vrot.lane.b32.xlu0 %v384, 120
    %v424 = vpop.permute.xlu0 %423
    %v427 = vsub.f32 %v417, %v422
    %v428 = vsub.f32 %v418, %v424
    %vm429 = vcmask 64512
    %v430 = vsel %vm429, %v427, 0.0
    %431 = vadd.xlane.f32.xlu0 %v430
    %v432 = vpop.xlane.xlu0 %431
    %v433 = vsel %vm429, %v428, 0.0
    %434 = vadd.xlane.f32.xlu0 %v433
    %v435 = vpop.xlane.xlu0 %434
    %v436 = vld [vmem:[#allocation8] sm:$0xff]
    %v437 = vld [vmem:[%s9] sm:$0x1]
    %v439 = vlaneseq
    %v440 = vshrl.u32 %v439, 7
    %v441 = vsub.s32 0, %v440
    %v442 = vrot.slane %v437, %v441
    %v445 = vsel %vm429, %v407, 0
    %v448 = vsel %vm429, %v408, 0
    %450 = vmatprep.subr.mxu0 0.0
    %451 = vmatpush1.msra.mxu0 %v436
    %452 = vmatprep.subr.mxu0 0.0
    %453 = vmatpush1.msra.mxu0 0.0
    %454 = vmatprep.subr.mxu0 0.0
    %455 = vmatpush1.msra.mxu0 0.0
    %456 = vmatprep.subr.mxu0 0.0
    %457 = vmatpush1.msra.mxu0 0.0
    %458 = vmatprep.subr.mxu0 0.0
    %459 = vmatpush1.msra.mxu0 0.0
    %460 = vmatprep.subr.mxu0 0.0
    %461 = vmatpush1.msra.mxu0 0.0
    %462 = vmatprep.subr.mxu0 0.0
    %463 = vmatpush1.msra.mxu0 0.0
    %464 = vmatprep.subr.mxu0 0.0
    %465 = vmatpush1.msra.mxu0 0.0
    %466 = vmatprep.subr.mxu0 0.0
    %467 = vmatpush1.msra.mxu0 0.0
    %468 = vmatprep.subr.mxu0 0.0
    %469 = vmatpush1.msra.mxu0 0.0
    %470 = vmatprep.subr.mxu0 0.0
    %471 = vmatpush1.msra.mxu0 0.0
    %472 = vmatprep.subr.mxu0 0.0
    %473 = vmatpush1.msra.mxu0 0.0
    %474 = vmatprep.subr.mxu0 0.0
    %475 = vmatpush1.msra.mxu0 0.0
    %476 = vmatprep.subr.mxu0 0.0
    %477 = vmatpush1.msra.mxu0 0.0
    %478 = vmatprep.subr.mxu0 0.0
    %479 = vmatpush1.msra.mxu0 0.0
    %480 = vmatprep.subr.mxu0 0.0
    %481 = vmatpush1.msra.mxu0 0.0
    %482 = vmatprep.subr.mxu0 0.0
    %483 = vmatpush1.msra.mxu0 0.0
    %484 = vmatprep.subr.mxu0 0.0
    %485 = vmatpush1.msra.mxu0 0.0
    %486 = vmatprep.subr.mxu0 0.0
    %487 = vmatpush1.msra.mxu0 0.0
    %488 = vmatprep.subr.mxu0 0.0
    %489 = vmatpush1.msra.mxu0 0.0
    %490 = vmatprep.subr.mxu0 0.0
    %491 = vmatpush1.msra.mxu0 0.0
    %492 = vmatprep.subr.mxu0 0.0
    %493 = vmatpush1.msra.mxu0 0.0
    %494 = vmatprep.subr.mxu0 0.0
    %495 = vmatpush1.msra.mxu0 0.0
    %496 = vmatprep.subr.mxu0 0.0
    %497 = vmatpush1.msra.mxu0 0.0
    %498 = vmatprep.subr.mxu0 0.0
    %499 = vmatpush1.msra.mxu0 0.0
    %500 = vmatprep.subr.mxu0 0.0
    %501 = vmatpush1.msra.mxu0 0.0
    %502 = vmatprep.subr.mxu0 0.0
    %503 = vmatpush1.msra.mxu0 0.0
    %504 = vmatprep.subr.mxu0 0.0
    %505 = vmatpush1.msra.mxu0 0.0
    %506 = vmatprep.subr.mxu0 0.0
    %507 = vmatpush1.msra.mxu0 0.0
    %508 = vmatprep.subr.mxu0 0.0
    %509 = vmatpush1.msra.mxu0 0.0
    %510 = vmatprep.subr.mxu0 0.0
    %511 = vmatpush1.msra.mxu0 0.0
    %512 = vmatprep.subr.mxu0 0.0
    %513 = vmatpush1.msra.mxu0 0.0
    %514 = vmatprep.mubr.f32.mxu0 0.0
    %515 = vmatmul.mubr.f32.gmra.mrb[0].mxu0 %v445
    %v516 = vpop.f32.mrb[0].mxu0
    %v517 = vadd.f32 %v442, %v516
    %v518 = vpop.f32.mrb[0].mxu0
    %519 = vmatprep.mubr.f32.mxu0 0.0
    %520 = vmatmul.mubr.f32.gmra.mrb[0].mxu0 %v448
    %v521 = vpop.f32.mrb[0].mxu0
    %v522 = vadd.f32 %v442, %v521
    %v523 = vpop.f32.mrb[0].mxu0
    %524 = vdwg.mxu0
    %v525 = vmax.f32 %v517, 0.0
    %v526 = vmax.f32 %v522, 0.0
    %v527 = vld [vmem:[%s10] sm:$0xff]
    %v528 = vld [vmem:[%s10 + $0x8] sm:$0xff]
    %v529 = vld [vmem:[%s10 + $0x10] sm:$0xff]
    %v530 = vld [vmem:[%s10 + $0x18] sm:$0xff]
    %v531 = vld [vmem:[%s11] sm:$0x1]
    %v533 = vlaneseq
    %v534 = vshrl.u32 %v533, 7
    %v535 = vsub.s32 0, %v534
    %v536 = vrot.slane %v531, %v535
    %v539 = vsel %vm207, %v525, 0
    %v542 = vsel %vm207, %v526, 0
    %544 = vmatprep.subr.mxu0 0.0
    %545 = vmatpush1.msra.mxu0 %v527
    %546 = vmatprep.subr.mxu0 0.0
    %547 = vmatpush1.msra.mxu0 %v528
    %548 = vmatprep.subr.mxu0 0.0
    %549 = vmatpush1.msra.mxu0 %v529
    %550 = vmatprep.subr.mxu0 0.0
    %551 = vmatpush1.msra.mxu0 %v530
    %552 = vmatprep.subr.mxu0 0.0
    %553 = vmatpush1.msra.mxu0 0.0
    %554 = vmatprep.subr.mxu0 0.0
    %555 = vmatpush1.msra.mxu0 0.0
    %556 = vmatprep.subr.mxu0 0.0
    %557 = vmatpush1.msra.mxu0 0.0
    %558 = vmatprep.subr.mxu0 0.0
    %559 = vmatpush1.msra.mxu0 0.0
    %560 = vmatprep.subr.mxu0 0.0
    %561 = vmatpush1.msra.mxu0 0.0
    %562 = vmatprep.subr.mxu0 0.0
    %563 = vmatpush1.msra.mxu0 0.0
    %564 = vmatprep.subr.mxu0 0.0
    %565 = vmatpush1.msra.mxu0 0.0
    %566 = vmatprep.subr.mxu0 0.0
    %567 = vmatpush1.msra.mxu0 0.0
    %568 = vmatprep.subr.mxu0 0.0
    %569 = vmatpush1.msra.mxu0 0.0
    %570 = vmatprep.subr.mxu0 0.0
    %571 = vmatpush1.msra.mxu0 0.0
    %572 = vmatprep.subr.mxu0 0.0
    %573 = vmatpush1.msra.mxu0 0.0
    %574 = vmatprep.subr.mxu0 0.0
    %575 = vmatpush1.msra.mxu0 0.0
    %576 = vmatprep.subr.mxu0 0.0
    %577 = vmatpush1.msra.mxu0 0.0
    %578 = vmatprep.subr.mxu0 0.0
    %579 = vmatpush1.msra.mxu0 0.0
    %580 = vmatprep.subr.mxu0 0.0
    %581 = vmatpush1.msra.mxu0 0.0
    %582 = vmatprep.subr.mxu0 0.0
    %583 = vmatpush1.msra.mxu0 0.0
    %584 = vmatprep.subr.mxu0 0.0
    %585 = vmatpush1.msra.mxu0 0.0
    %586 = vmatprep.subr.mxu0 0.0
    %587 = vmatpush1.msra.mxu0 0.0
    %588 = vmatprep.subr.mxu0 0.0
    %589 = vmatpush1.msra.mxu0 0.0
    %590 = vmatprep.subr.mxu0 0.0
    %591 = vmatpush1.msra.mxu0 0.0
    %592 = vmatprep.subr.mxu0 0.0
    %593 = vmatpush1.msra.mxu0 0.0
    %594 = vmatprep.subr.mxu0 0.0
    %595 = vmatpush1.msra.mxu0 0.0
    %596 = vmatprep.subr.mxu0 0.0
    %597 = vmatpush1.msra.mxu0 0.0
    %598 = vmatprep.subr.mxu0 0.0
    %599 = vmatpush1.msra.mxu0 0.0
    %600 = vmatprep.subr.mxu0 0.0
    %601 = vmatpush1.msra.mxu0 0.0
    %602 = vmatprep.subr.mxu0 0.0
    %603 = vmatpush1.msra.mxu0 0.0
    %604 = vmatprep.subr.mxu0 0.0
    %605 = vmatpush1.msra.mxu0 0.0
    %606 = vmatprep.subr.mxu0 0.0
    %607 = vmatpush1.msra.mxu0 0.0
    %608 = vmatprep.mubr.f32.mxu0 0.0
    %609 = vmatmul.mubr.f32.gmra.mrb[0].mxu0 %v539
    %v610 = vpop.f32.mrb[0].mxu0
    %v611 = vadd.f32 %v536, %v610
    %v612 = vpop.f32.mrb[0].mxu0
    %613 = vmatprep.mubr.f32.mxu0 0.0
    %614 = vmatmul.mubr.f32.gmra.mrb[0].mxu0 %v542
    %v615 = vpop.f32.mrb[0].mxu0
    %v616 = vadd.f32 %v536, %v615
    %v617 = vpop.f32.mrb[0].mxu0
    %618 = vdwg.mxu0
    %v619 = vmax.f32 %v611, 0.0
    %v620 = vmax.f32 %v616, 0.0
    %v621 = vld [vmem:[%s12] sm:$0xff]
    %v622 = vld [vmem:[%s12 + $0x8] sm:$0xff]
    %v623 = vld [vmem:[%s12 + $0x10] sm:$0xff]
    %v624 = vld [vmem:[%s12 + $0x18] sm:$0xff]
    %v625 = vld [vmem:[%s13] sm:$0x1]
    %v627 = vlaneseq
    %v628 = vshrl.u32 %v627, 7
    %v629 = vsub.s32 0, %v628
    %v630 = vrot.slane %v625, %v629
    %v633 = vsel %vm207, %v619, 0
    %v636 = vsel %vm207, %v620, 0
    %638 = vmatprep.subr.mxu0 0.0
    %639 = vmatpush1.msra.mxu0 %v621
    %640 = vmatprep.subr.mxu0 0.0
    %641 = vmatpush1.msra.mxu0 %v622
    %642 = vmatprep.subr.mxu0 0.0
    %643 = vmatpush1.msra.mxu0 %v623
    %644 = vmatprep.subr.mxu0 0.0
    %645 = vmatpush1.msra.mxu0 %v624
    %646 = vmatprep.subr.mxu0 0.0
    %647 = vmatpush1.msra.mxu0 0.0
    %648 = vmatprep.subr.mxu0 0.0
    %649 = vmatpush1.msra.mxu0 0.0
    %650 = vmatprep.subr.mxu0 0.0
    %651 = vmatpush1.msra.mxu0 0.0
    %652 = vmatprep.subr.mxu0 0.0
    %653 = vmatpush1.msra.mxu0 0.0
    %654 = vmatprep.subr.mxu0 0.0
    %655 = vmatpush1.msra.mxu0 0.0
    %656 = vmatprep.subr.mxu0 0.0
    %657 = vmatpush1.msra.mxu0 0.0
    %658 = vmatprep.subr.mxu0 0.0
    %659 = vmatpush1.msra.mxu0 0.0
    %660 = vmatprep.subr.mxu0 0.0
    %661 = vmatpush1.msra.mxu0 0.0
    %662 = vmatprep.subr.mxu0 0.0
    %663 = vmatpush1.msra.mxu0 0.0
    %664 = vmatprep.subr.mxu0 0.0
    %665 = vmatpush1.msra.mxu0 0.0
    %666 = vmatprep.subr.mxu0 0.0
    %667 = vmatpush1.msra.mxu0 0.0
    %668 = vmatprep.subr.mxu0 0.0
    %669 = vmatpush1.msra.mxu0 0.0
    %670 = vmatprep.subr.mxu0 0.0
    %671 = vmatpush1.msra.mxu0 0.0
    %672 = vmatprep.subr.mxu0 0.0
    %673 = vmatpush1.msra.mxu0 0.0
    %674 = vmatprep.subr.mxu0 0.0
    %675 = vmatpush1.msra.mxu0 0.0
    %676 = vmatprep.subr.mxu0 0.0
    %677 = vmatpush1.msra.mxu0 0.0
    %678 = vmatprep.subr.mxu0 0.0
    %679 = vmatpush1.msra.mxu0 0.0
    %680 = vmatprep.subr.mxu0 0.0
    %681 = vmatpush1.msra.mxu0 0.0
    %682 = vmatprep.subr.mxu0 0.0
    %683 = vmatpush1.msra.mxu0 0.0
    %684 = vmatprep.subr.mxu0 0.0
    %685 = vmatpush1.msra.mxu0 0.0
    %686 = vmatprep.subr.mxu0 0.0
    %687 = vmatpush1.msra.mxu0 0.0
    %688 = vmatprep.subr.mxu0 0.0
    %689 = vmatpush1.msra.mxu0 0.0
    %690 = vmatprep.subr.mxu0 0.0
    %691 = vmatpush1.msra.mxu0 0.0
    %692 = vmatprep.subr.mxu0 0.0
    %693 = vmatpush1.msra.mxu0 0.0
    %694 = vmatprep.subr.mxu0 0.0
    %695 = vmatpush1.msra.mxu0 0.0
    %696 = vmatprep.subr.mxu0 0.0
    %697 = vmatpush1.msra.mxu0 0.0
    %698 = vmatprep.subr.mxu0 0.0
    %699 = vmatpush1.msra.mxu0 0.0
    %700 = vmatprep.subr.mxu0 0.0
    %701 = vmatpush1.msra.mxu0 0.0
    %702 = vmatprep.mubr.f32.mxu0 0.0
    %703 = vmatmul.mubr.f32.gmra.mrb[0].mxu0 %v633
    %v704 = vpop.f32.mrb[0].mxu0
    %v705 = vadd.f32 %v630, %v704
    %v706 = vpop.f32.mrb[0].mxu0
    %707 = vmatprep.mubr.f32.mxu0 0.0
    %708 = vmatmul.mubr.f32.gmra.mrb[0].mxu0 %v636
    %v709 = vpop.f32.mrb[0].mxu0
    %v710 = vadd.f32 %v630, %v709
    %v711 = vpop.f32.mrb[0].mxu0
    %712 = vdwg.mxu0
    %v713 = vsub.f32 0.0, %v705
    %v714 = vsub.f32 0.0, %v710
    %v715 = vmul.f32 %v713, 1.442695
    %v716 = vpow.pop %v715
    %v717 = vmul.f32 %v714, 1.442695
    %v718 = vpow.pop %v717
    %v719 = vadd.f32 %v99, 0.5
    %v720 = vadd.f32 %v100, 0.5
    %v721 = vsub.f32 %v719, %v705
    %v722 = vsub.f32 %v720, %v710
    %725 = vrot.lane.b32.xlu0 %v716, 112
    %v726 = vpop.permute.xlu0 %725
    %727 = vrot.lane.b32.xlu0 %v718, 112
    %v728 = vpop.permute.xlu0 %727
    %v731 = vmul.f32 %v721, %v726
    %v732 = vmul.f32 %v722, %v728
    %v733 = vmul.f32 %v731, -0.5
    %v734 = vmul.f32 %v732, -0.5
    %v735 = vmul.f32 %v733, %v731
    %v736 = vmul.f32 %v734, %v732
    %739 = vrot.lane.b32.xlu0 %v705, 112
    %v740 = vpop.permute.xlu0 %739
    %741 = vrot.lane.b32.xlu0 %v710, 112
    %v742 = vpop.permute.xlu0 %741
    %v745 = vsub.f32 %v735, %v740
    %v746 = vsub.f32 %v736, %v742
    %v747 = vsub.f32 %v745, 0.9189385
    %v748 = vsub.f32 %v746, 0.9189385
    %v749 = vsel %vm112, %v747, 0.0
    %750 = vadd.xlane.f32.xlu0 %v749
    %v751 = vpop.xlane.xlu0 %750
    %v752 = vsel %vm112, %v748, 0.0
    %753 = vadd.xlane.f32.xlu0 %v752
    %v754 = vpop.xlane.xlu0 %753
    %v755 = vsub.f32 %v751, %v432
    %v756 = vsub.f32 %v754, %v435
    %v759 = vlaneseq
    %v760 = vand.u32 %v759, 127
    %v761 = vlaneseq
    %v762 = vshrl.u32 %v761, 7
    %v763 = vsub.s32 %v760, %v762
    %v764 = vrot.slane %v755, %v763
    %v765 = vadd.s32 %v760, 4294967288
    %v766 = vlaneseq
    %v767 = vshrl.u32 %v766, 7
    %v768 = vsub.s32 %v765, %v767
    %v769 = vrot.slane %v756, %v768
    %vm770 = vcmask 130112
    %v771 = vsel %vm770, %v769, %v764
    %vm773 = vcmask 122880
    %774 = vst.msk [vmem:[#allocation10] sm:$0x1] %vm773, %v771
    // Predicated region
    $region74: #{tpu_custom_call.1} parent=1 // pred_check
      _
    $region75: #{tpu_custom_call.1} parent=1 // pred_check_branch
      %776 = sbr.rel (0) target = $region77
    $region76: #{tpu_custom_call.1} parent=1 // pred_region
      %s778 = ssub.s32 16, 16
      %779 = vsyncadd [#allocation4], %s778
      %s781 = sshll.u32 [#allocation10], 4
      %s782 = int_to_ptr.vmem [resolvable:$true] %s781
      %784 = dma.vmem_to_hbm [thread:$0]  %s782, 16, %s14, [#allocation4]
    $region77: #{tpu_custom_call.1} parent=1 // pred_fallthru
      _
    // Predicated region
    $region78: #{tpu_custom_call.1} parent=1 // pred_check
      _
    $region79: #{tpu_custom_call.1} parent=1 // pred_check_branch
      %786 = sbr.rel (0) target = $region81
    $region80: #{tpu_custom_call.1} parent=1 // pred_region
      %787 = dma.done [#allocation4], 16
    $region81: #{tpu_custom_call.1} parent=1 // pred_fallthru
      _
    %788 = vsyncpa [#allocation3], 1
    %789 = vsyncpa [#allocation6], 1
    %790 = vsyncpa [#allocation9], 1
    %791 = vsyncpa [#allocation4], 1

</llo_original>
